<compile_context>
chip_gen: v7x
topology: tpu7x:2x2x1
jax: 0.10.0
libtpu: 0.0.40
codegen_flags: <defaults>
</compile_context>

<pallas_src>
import jax
import jax.numpy as jnp
from jax.experimental import pallas as pl
from jax.experimental.pallas import tpu as pltpu


def _round_up(x, m):
    return ((x + m - 1) // m) * m


def _cdiv(a, b):
    return -(-a // b)


def _vmem_capacity_bytes():
    """Per-TensorCore VMEM capacity; conservative fallback = v7x's 64 MiB."""
    try:
        info = pltpu.get_tpu_info()
        cap = getattr(info, "vmem_capacity_bytes", None)
        if cap:
            return int(cap)
    except Exception:
        pass
    return 64 * 1024 * 1024


def ista_kernel(gammas_ref, xsis_ref, ht_ref, x0_ref, y_ref, out_ref, g_ref, c_ref):
    # gammas_ref, xsis_ref : SMEM (L,) f32 per-layer scalars
    # ht_ref  : VMEM (TB, Np, Mp)   H transposed (lane dim = Mp), f32 or bf16
    # x0_ref  : VMEM (TB, 1, Np)
    # y_ref   : VMEM (TB, 1, Mp)
    # out_ref : VMEM (TB, 1, Np)
    # g_ref   : VMEM scratch (TB, Np, Np) f32   -- Gram matrix G = H^T H
    # c_ref   : VMEM scratch (TB, 1, Np) f32    -- c = H^T y
    ht = ht_ref[...]                               # (TB, Np, Mp)
    y = y_ref[...].astype(ht.dtype)                # (TB, 1, Mp)

    # ---- Loop-invariant Gram system, built once per batch tile on the MXU ----
    # G[b,i,j] = sum_m H[b,m,i] * H[b,m,j]   (lane-contracting batched matmul)
    g_ref[...] = jnp.einsum("bim,bjm->bij", ht, ht,
                            preferred_element_type=jnp.float32)
    # c[b,0,i] = sum_m y[b,m] * H[b,m,i]     (MXU matvec, 1-row batched matmul)
    c_ref[...] = jnp.einsum("bqm,bim->bqi", y, ht,
                            preferred_element_type=jnp.float32)

    x = x0_ref[...].astype(jnp.float32)            # (TB, 1, Np), f32 working copy

    def layer_update(gamma, xsi, x_cur):
        thr = gamma * xsi
        # MXU batched matvec: contracts G's last axis, so this is exactly (G x).
        gx = jnp.einsum("bqj,bij->bqi", x_cur, g_ref[...],
                        preferred_element_type=jnp.float32)        # (TB, 1, Np)
        z = x_cur - gamma * (gx - c_ref[...])
        return z - jnp.clip(z, -thr, thr)          # soft-threshold shrink(z, thr)

    num_layers = gammas_ref.shape[0]
    if num_layers <= 16:
        # Shallow unroll: static Python loop (full LLO scheduler visibility).
        for i in range(num_layers):
            x = layer_update(gammas_ref[i], xsis_ref[i], x)
    else:
        # Deep unrolls: rolled loop, per-layer scalars read dynamically from SMEM.
        x = jax.lax.fori_loop(
            0, num_layers,
            lambda i, xc: layer_update(gammas_ref[i], xsis_ref[i], xc), x)

    out_ref[...] = x.astype(out_ref.dtype)         # single lane-dense store


def ista_forward(H, x0, y, x_true, gammas, xsis, *, h_dtype=None):
    """Unrolled ISTA forward.  x_true is unused (kept for torch signature parity)."""
    del x_true
    B, M, N = H.shape
    assert x0.shape == (B, N) and y.shape == (B, M)
    out_dtype = x0.dtype
    h_dtype = jnp.dtype(h_dtype) if h_dtype is not None else H.dtype

    gammas = jnp.asarray(gammas, dtype=jnp.float32)
    xsis = jnp.asarray(xsis, dtype=jnp.float32)
    assert gammas.ndim == 1 and gammas.shape == xsis.shape

    # ---- Lane-dense padding.  Align the Gram contraction dim (Mp) to the
    # 256-wide v6e/v7x MXU when that is (nearly) free; never inflate small M.
    LANE = 128
    Np = _round_up(N, LANE)
    Mp = _round_up(M, LANE)
    if M >= 256:
        mp256 = _round_up(M, 256)
        if mp256 - Mp <= max(M // 8, 1):
            Mp = mp256

    # ---- VMEM-budget-aware batch tile.
    h_bytes = jnp.dtype(h_dtype).itemsize
    per_b = (3 * Mp * Np * h_bytes        # H^T tile: 2 pipeline buffers + in-kernel value
             + 2 * Np * Np * 4            # G scratch + Gram-matmul result temporary
             + 8 * (Np + Mp) * 4)         # x0/y/out buffers, c, working vectors (generous)
    vmem_cap = _vmem_capacity_bytes()
    tile_budget = int(vmem_cap * 0.55)    # headroom for double-buffering / temporaries
    # >= 2 tiles when B > 1 (v7x megacore + DMA/compute overlap); more if VMEM demands it.
    n_tiles = max(_cdiv(B * per_b, max(tile_budget, 1)), min(B, 2), 1)
    TB = _cdiv(B, n_tiles)
    n_tiles = _cdiv(B, TB)
    Bp = TB * n_tiles                     # at most one partial tile of batch padding

    # ---- H^T: transpose + zero-pad + optional bf16 cast as ONE fused pass over H.
    ht_core = jnp.swapaxes(H, 1, 2).astype(h_dtype)            # (B, N, M)
    if (Bp, Np, Mp) != (B, N, M):
        Ht = jnp.zeros((Bp, Np, Mp), h_dtype).at[:B, :N, :M].set(ht_core)
    else:
        Ht = ht_core

    # x0 / y / out carried as (batch, 1, lane) so batch tiling is unconstrained
    # by the sublane rule and all in-kernel math is rank-3 (MXU-friendly).
    x0r = x0.reshape(B, 1, N)
    yr = y.reshape(B, 1, M)
    if (Bp, Np) != (B, N):
        x0p = jnp.zeros((Bp, 1, Np), out_dtype).at[:B, :, :N].set(x0r.astype(out_dtype))
    else:
        x0p = x0r.astype(out_dtype)
    if (Bp, Mp) != (B, M):
        yp = jnp.zeros((Bp, 1, Mp), y.dtype).at[:B, :, :M].set(yr)
    else:
        yp = yr

    out = pl.pallas_call(
        ista_kernel,
        out_shape=jax.ShapeDtypeStruct((Bp, 1, Np), out_dtype),
        grid=(n_tiles,),
        in_specs=[
            pl.BlockSpec(memory_space=pltpu.MemorySpace.SMEM),        # gammas (L,)
            pl.BlockSpec(memory_space=pltpu.MemorySpace.SMEM),        # xsis   (L,)
            pl.BlockSpec((TB, Np, Mp), lambda b: (b, 0, 0)),          # H^T tile
            pl.BlockSpec((TB, 1, Np), lambda b: (b, 0, 0)),           # x0 tile
            pl.BlockSpec((TB, 1, Mp), lambda b: (b, 0, 0)),           # y tile
        ],
        out_specs=pl.BlockSpec((TB, 1, Np), lambda b: (b, 0, 0)),
        scratch_shapes=[
            pltpu.VMEM((TB, Np, Np), jnp.float32),                    # G = H^T H
            pltpu.VMEM((TB, 1, Np), jnp.float32),                     # c = H^T y
        ],
        compiler_params=pltpu.CompilerParams(
            dimension_semantics=("parallel",),                        # megacore on v7x
            vmem_limit_bytes=int(vmem_cap * 0.9),
        ),
    )(gammas, xsis, Ht, x0p, yp)

    return out[:B, 0, :N]


def ista_reference(H, x0, y, gammas, xsis):
    # Pure-JAX reference matching the original per-layer PyTorch formulation.
    x = x0
    for gamma, xsi in zip(gammas, xsis):
        r = jnp.einsum("bmn,bn->bm", H, x) - y
        g = jnp.einsum("bmn,bm->bn", H, r)
        z = x - gamma * g
        x = jnp.sign(z) * jnp.maximum(jnp.abs(z) - gamma * xsi, 0.0)
    return x


if __name__ == "__main__":
    num_layers = 4
    B, M, N = 2, 16, 8

    key = jax.random.PRNGKey(0)
    kH, kx, ky, kxt = jax.random.split(key, 4)
    H = jax.random.normal(kH, (B, M, N), dtype=jnp.float32) / jnp.sqrt(M)
    x0 = jax.random.normal(kx, (B, N), dtype=jnp.float32)
    y = jax.random.normal(ky, (B, M), dtype=jnp.float32)
    x_true = jax.random.normal(kxt, (B, N), dtype=jnp.float32)  # unused in forward

    # Deterministic per-layer stepsize / regularization parameters
    # (stepsize_regularization_arch() returns (gamma, xsi) scalars per layer).
    gammas = jnp.full((num_layers,), 0.1, dtype=jnp.float32)
    xsis = jnp.full((num_layers,), 0.05, dtype=jnp.float32)

    ref = ista_reference(H, x0, y, list(gammas), list(xsis))

    # Full-precision H path (tight check against the per-layer reference).
    out = jax.block_until_ready(ista_forward(H, x0, y, x_true, gammas, xsis))
    assert out.shape == ref.shape
    assert jnp.allclose(out, ref, atol=1e-5, rtol=1e-4), (out, ref)

    # bf16-H path (bf16-native MXU + halved H DMA bytes); f32 accumulation,
    # so only the Gram system carries ~1e-3 relative error -> loose tolerance.
    out_bf16 = jax.block_until_ready(
        ista_forward(H, x0, y, x_true, gammas, xsis, h_dtype=jnp.bfloat16))
    assert out_bf16.shape == ref.shape
    assert jnp.allclose(out_bf16, ref, atol=5e-2, rtol=5e-2), (out_bf16, ref)

    print("KERNEL_OK")
</pallas_src>

<mosaic_0001>
module attributes {stable_mosaic.version = 11 : i64} {
  func.func @ista_kernel(%arg0: i32, %arg1: memref<4xf32, #tpu.memory_space<smem>>, %arg2: memref<4xf32, #tpu.memory_space<smem>>, %arg3: memref<1x128x128xf32, #tpu.memory_space<vmem>>, %arg4: memref<1x1x128xf32, #tpu.memory_space<vmem>>, %arg5: memref<1x1x128xf32, #tpu.memory_space<vmem>>, %arg6: memref<1x1x128xf32, #tpu.memory_space<vmem>>, %arg7: memref<1x128x128xf32, #tpu.memory_space<vmem>>, %arg8: memref<1x1x128xf32, #tpu.memory_space<vmem>>) attributes {dimension_semantics = [#tpu.dimension_semantics<parallel>], iteration_bounds = array<i64: 2>, scalar_prefetch = 0 : i64, scratch_operands = 2 : i64, tpu.core_type = #tpu.core_type<tc>, window_params = [{transform_indices = @transform_0, window_bounds = array<i64: 4>}, {transform_indices = @transform_1, window_bounds = array<i64: 4>}, {transform_indices = @transform_2, window_bounds = array<i64: 1, 128, 128>}, {transform_indices = @transform_3, window_bounds = array<i64: 1, 1, 128>}, {transform_indices = @transform_4, window_bounds = array<i64: 1, 1, 128>}, {transform_indices = @transform_5, window_bounds = array<i64: 1, 1, 128>}]} {
    %c0 = arith.constant 0 : index
    %c0_0 = arith.constant 0 : index
    %c0_1 = arith.constant 0 : index
    %0 = vector.load %arg3[%c0, %c0_0, %c0_1] : memref<1x128x128xf32, #tpu.memory_space<vmem>>, vector<1x128x128xf32>
    %c0_2 = arith.constant 0 : index
    %c0_3 = arith.constant 0 : index
    %c0_4 = arith.constant 0 : index
    %1 = vector.load %arg5[%c0_2, %c0_3, %c0_4] : memref<1x1x128xf32, #tpu.memory_space<vmem>>, vector<1x1x128xf32>
    "tpu.trace_start"() <{level = 10 : i32, message = "bim,bjm->bij"}> : () -> ()
    %cst = arith.constant dense<0.000000e+00> : vector<1x128x128xf32>
    %2 = tpu.matmul %0, %0, %cst {dimension_numbers = #tpu.dot_dimension_numbers<[2], [2], [1], [1], [0, 0, 0, 1, 1, 1], [0], [0]>} : vector<1x128x128xf32>, vector<1x128x128xf32>, vector<1x128x128xf32> -> vector<1x128x128xf32>
    "tpu.trace_stop"() : () -> ()
    %c0_5 = arith.constant 0 : index
    %c0_6 = arith.constant 0 : index
    %c0_7 = arith.constant 0 : index
    %3 = vector.load %arg7[%c0_5, %c0_6, %c0_7] : memref<1x128x128xf32, #tpu.memory_space<vmem>>, vector<1x128x128xf32>
    tpu.vector_store %arg7[%c0_5, %c0_6, %c0_7], %2 {strides = array<i32>} : memref<1x128x128xf32, #tpu.memory_space<vmem>>, vector<1x128x128xf32>,
    "tpu.trace_start"() <{level = 10 : i32, message = "bqm,bim->bqi"}> : () -> ()
    %cst_8 = arith.constant dense<0.000000e+00> : vector<1x1x128xf32>
    %4 = tpu.matmul %1, %0, %cst_8 {dimension_numbers = #tpu.dot_dimension_numbers<[2], [2], [1], [1], [0, 0, 0, 1, 1, 1], [0], [0]>} : vector<1x1x128xf32>, vector<1x128x128xf32>, vector<1x1x128xf32> -> vector<1x1x128xf32>
    "tpu.trace_stop"() : () -> ()
    %c0_9 = arith.constant 0 : index
    %c0_10 = arith.constant 0 : index
    %c0_11 = arith.constant 0 : index
    %5 = vector.load %arg8[%c0_9, %c0_10, %c0_11] : memref<1x1x128xf32, #tpu.memory_space<vmem>>, vector<1x1x128xf32>
    tpu.vector_store %arg8[%c0_9, %c0_10, %c0_11], %4 {strides = array<i32>} : memref<1x1x128xf32, #tpu.memory_space<vmem>>, vector<1x1x128xf32>,
    %c0_12 = arith.constant 0 : index
    %c0_13 = arith.constant 0 : index
    %c0_14 = arith.constant 0 : index
    %6 = vector.load %arg4[%c0_12, %c0_13, %c0_14] : memref<1x1x128xf32, #tpu.memory_space<vmem>>, vector<1x1x128xf32>
    %c0_15 = arith.constant 0 : index
    %7 = memref.load %arg1[%c0_15] : memref<4xf32, #tpu.memory_space<smem>>
    %c0_16 = arith.constant 0 : index
    %8 = memref.load %arg2[%c0_16] : memref<4xf32, #tpu.memory_space<smem>>
    %9 = arith.mulf %7, %8 : f32
    %c0_17 = arith.constant 0 : index
    %c0_18 = arith.constant 0 : index
    %c0_19 = arith.constant 0 : index
    %10 = vector.load %arg7[%c0_17, %c0_18, %c0_19] : memref<1x128x128xf32, #tpu.memory_space<vmem>>, vector<1x128x128xf32>
    "tpu.trace_start"() <{level = 10 : i32, message = "bqj,bij->bqi"}> : () -> ()
    %cst_20 = arith.constant dense<0.000000e+00> : vector<1x1x128xf32>
    %11 = tpu.matmul %6, %10, %cst_20 {dimension_numbers = #tpu.dot_dimension_numbers<[2], [2], [1], [1], [0, 0, 0, 1, 1, 1], [0], [0]>} : vector<1x1x128xf32>, vector<1x128x128xf32>, vector<1x1x128xf32> -> vector<1x1x128xf32>
    "tpu.trace_stop"() : () -> ()
    %c0_21 = arith.constant 0 : index
    %c0_22 = arith.constant 0 : index
    %c0_23 = arith.constant 0 : index
    %12 = vector.load %arg8[%c0_21, %c0_22, %c0_23] : memref<1x1x128xf32, #tpu.memory_space<vmem>>, vector<1x1x128xf32>
    %13 = arith.subf %11, %12 : vector<1x1x128xf32>
    %14 = vector.broadcast %7 : f32 to vector<1x1x128xf32>
    %15 = arith.mulf %14, %13 : vector<1x1x128xf32>
    %16 = arith.subf %6, %15 : vector<1x1x128xf32>
    %cst_24 = arith.constant 0.000000e+00 : f32
    %17 = arith.subf %cst_24, %9 : f32
    %18 = vector.broadcast %17 : f32 to vector<1x1x128xf32>
    %19 = arith.maximumf %18, %16 : vector<1x1x128xf32>
    %20 = vector.broadcast %9 : f32 to vector<1x1x128xf32>
    %21 = arith.minimumf %20, %19 : vector<1x1x128xf32>
    %22 = arith.subf %16, %21 : vector<1x1x128xf32>
    %c1 = arith.constant 1 : index
    %23 = memref.load %arg1[%c1] : memref<4xf32, #tpu.memory_space<smem>>
    %c1_25 = arith.constant 1 : index
    %24 = memref.load %arg2[%c1_25] : memref<4xf32, #tpu.memory_space<smem>>
    %25 = arith.mulf %23, %24 : f32
    %c0_26 = arith.constant 0 : index
    %c0_27 = arith.constant 0 : index
    %c0_28 = arith.constant 0 : index
    %26 = vector.load %arg7[%c0_26, %c0_27, %c0_28] : memref<1x128x128xf32, #tpu.memory_space<vmem>>, vector<1x128x128xf32>
    "tpu.trace_start"() <{level = 10 : i32, message = "bqj,bij->bqi"}> : () -> ()
    %cst_29 = arith.constant dense<0.000000e+00> : vector<1x1x128xf32>
    %27 = tpu.matmul %22, %26, %cst_29 {dimension_numbers = #tpu.dot_dimension_numbers<[2], [2], [1], [1], [0, 0, 0, 1, 1, 1], [0], [0]>} : vector<1x1x128xf32>, vector<1x128x128xf32>, vector<1x1x128xf32> -> vector<1x1x128xf32>
    "tpu.trace_stop"() : () -> ()
    %c0_30 = arith.constant 0 : index
    %c0_31 = arith.constant 0 : index
    %c0_32 = arith.constant 0 : index
    %28 = vector.load %arg8[%c0_30, %c0_31, %c0_32] : memref<1x1x128xf32, #tpu.memory_space<vmem>>, vector<1x1x128xf32>
    %29 = arith.subf %27, %28 : vector<1x1x128xf32>
    %30 = vector.broadcast %23 : f32 to vector<1x1x128xf32>
    %31 = arith.mulf %30, %29 : vector<1x1x128xf32>
    %32 = arith.subf %22, %31 : vector<1x1x128xf32>
    %cst_33 = arith.constant 0.000000e+00 : f32
    %33 = arith.subf %cst_33, %25 : f32
    %34 = vector.broadcast %33 : f32 to vector<1x1x128xf32>
    %35 = arith.maximumf %34, %32 : vector<1x1x128xf32>
    %36 = vector.broadcast %25 : f32 to vector<1x1x128xf32>
    %37 = arith.minimumf %36, %35 : vector<1x1x128xf32>
    %38 = arith.subf %32, %37 : vector<1x1x128xf32>
    %c2 = arith.constant 2 : index
    %39 = memref.load %arg1[%c2] : memref<4xf32, #tpu.memory_space<smem>>
    %c2_34 = arith.constant 2 : index
    %40 = memref.load %arg2[%c2_34] : memref<4xf32, #tpu.memory_space<smem>>
    %41 = arith.mulf %39, %40 : f32
    %c0_35 = arith.constant 0 : index
    %c0_36 = arith.constant 0 : index
    %c0_37 = arith.constant 0 : index
    %42 = vector.load %arg7[%c0_35, %c0_36, %c0_37] : memref<1x128x128xf32, #tpu.memory_space<vmem>>, vector<1x128x128xf32>
    "tpu.trace_start"() <{level = 10 : i32, message = "bqj,bij->bqi"}> : () -> ()
    %cst_38 = arith.constant dense<0.000000e+00> : vector<1x1x128xf32>
    %43 = tpu.matmul %38, %42, %cst_38 {dimension_numbers = #tpu.dot_dimension_numbers<[2], [2], [1], [1], [0, 0, 0, 1, 1, 1], [0], [0]>} : vector<1x1x128xf32>, vector<1x128x128xf32>, vector<1x1x128xf32> -> vector<1x1x128xf32>
    "tpu.trace_stop"() : () -> ()
    %c0_39 = arith.constant 0 : index
    %c0_40 = arith.constant 0 : index
    %c0_41 = arith.constant 0 : index
    %44 = vector.load %arg8[%c0_39, %c0_40, %c0_41] : memref<1x1x128xf32, #tpu.memory_space<vmem>>, vector<1x1x128xf32>
    %45 = arith.subf %43, %44 : vector<1x1x128xf32>
    %46 = vector.broadcast %39 : f32 to vector<1x1x128xf32>
    %47 = arith.mulf %46, %45 : vector<1x1x128xf32>
    %48 = arith.subf %38, %47 : vector<1x1x128xf32>
    %cst_42 = arith.constant 0.000000e+00 : f32
    %49 = arith.subf %cst_42, %41 : f32
    %50 = vector.broadcast %49 : f32 to vector<1x1x128xf32>
    %51 = arith.maximumf %50, %48 : vector<1x1x128xf32>
    %52 = vector.broadcast %41 : f32 to vector<1x1x128xf32>
    %53 = arith.minimumf %52, %51 : vector<1x1x128xf32>
    %54 = arith.subf %48, %53 : vector<1x1x128xf32>
    %c3 = arith.constant 3 : index
    %55 = memref.load %arg1[%c3] : memref<4xf32, #tpu.memory_space<smem>>
    %c3_43 = arith.constant 3 : index
    %56 = memref.load %arg2[%c3_43] : memref<4xf32, #tpu.memory_space<smem>>
    %57 = arith.mulf %55, %56 : f32
    %c0_44 = arith.constant 0 : index
    %c0_45 = arith.constant 0 : index
    %c0_46 = arith.constant 0 : index
    %58 = vector.load %arg7[%c0_44, %c0_45, %c0_46] : memref<1x128x128xf32, #tpu.memory_space<vmem>>, vector<1x128x128xf32>
    "tpu.trace_start"() <{level = 10 : i32, message = "bqj,bij->bqi"}> : () -> ()
    %cst_47 = arith.constant dense<0.000000e+00> : vector<1x1x128xf32>
    %59 = tpu.matmul %54, %58, %cst_47 {dimension_numbers = #tpu.dot_dimension_numbers<[2], [2], [1], [1], [0, 0, 0, 1, 1, 1], [0], [0]>} : vector<1x1x128xf32>, vector<1x128x128xf32>, vector<1x1x128xf32> -> vector<1x1x128xf32>
    "tpu.trace_stop"() : () -> ()
    %c0_48 = arith.constant 0 : index
    %c0_49 = arith.constant 0 : index
    %c0_50 = arith.constant 0 : index
    %60 = vector.load %arg8[%c0_48, %c0_49, %c0_50] : memref<1x1x128xf32, #tpu.memory_space<vmem>>, vector<1x1x128xf32>
    %61 = arith.subf %59, %60 : vector<1x1x128xf32>
    %62 = vector.broadcast %55 : f32 to vector<1x1x128xf32>
    %63 = arith.mulf %62, %61 : vector<1x1x128xf32>
    %64 = arith.subf %54, %63 : vector<1x1x128xf32>
    %cst_51 = arith.constant 0.000000e+00 : f32
    %65 = arith.subf %cst_51, %57 : f32
    %66 = vector.broadcast %65 : f32 to vector<1x1x128xf32>
    %67 = arith.maximumf %66, %64 : vector<1x1x128xf32>
    %68 = vector.broadcast %57 : f32 to vector<1x1x128xf32>
    %69 = arith.minimumf %68, %67 : vector<1x1x128xf32>
    %70 = arith.subf %64, %69 : vector<1x1x128xf32>
    %c0_52 = arith.constant 0 : index
    %c0_53 = arith.constant 0 : index
    %c0_54 = arith.constant 0 : index
    %71 = vector.load %arg6[%c0_52, %c0_53, %c0_54] : memref<1x1x128xf32, #tpu.memory_space<vmem>>, vector<1x1x128xf32>
    tpu.vector_store %arg6[%c0_52, %c0_53, %c0_54], %70 {strides = array<i32>} : memref<1x1x128xf32, #tpu.memory_space<vmem>>, vector<1x1x128xf32>,
    return
  }
  func.func @transform_0(%arg0: i32) -> i32 {
    %c0_i32 = arith.constant 0 : i32
    %c0_i32_0 = arith.constant 0 : i32
    return %c0_i32 : i32
  }
  func.func @transform_1(%arg0: i32) -> i32 {
    %c0_i32 = arith.constant 0 : i32
    %c0_i32_0 = arith.constant 0 : i32
    return %c0_i32 : i32
  }
  func.func @transform_2(%arg0: i32) -> (i32, i32, i32) {
    %c0_i32 = arith.constant 0 : i32
    %c0_i32_0 = arith.constant 0 : i32
    %c0_i32_1 = arith.constant 0 : i32
    return %arg0, %c0_i32, %c0_i32_0 : i32, i32, i32
  }
  func.func @transform_3(%arg0: i32) -> (i32, i32, i32) {
    %c0_i32 = arith.constant 0 : i32
    %c0_i32_0 = arith.constant 0 : i32
    %c0_i32_1 = arith.constant 0 : i32
    return %arg0, %c0_i32, %c0_i32_0 : i32, i32, i32
  }
  func.func @transform_4(%arg0: i32) -> (i32, i32, i32) {
    %c0_i32 = arith.constant 0 : i32
    %c0_i32_0 = arith.constant 0 : i32
    %c0_i32_1 = arith.constant 0 : i32
    return %arg0, %c0_i32, %c0_i32_0 : i32, i32, i32
  }
  func.func @transform_5(%arg0: i32) -> (i32, i32, i32) {
    %c0_i32 = arith.constant 0 : i32
    %c0_i32_0 = arith.constant 0 : i32
    %c0_i32_1 = arith.constant 0 : i32
    return %arg0, %c0_i32, %c0_i32_0 : i32, i32, i32
  }
}

</mosaic_0001>

<llo_original>
// kernel: tpu_custom_call.1
$region0: #{tpu_custom_call.1}
  #allocation0 [shape = 'u32[]', space=smem, size = 0x4, offset = 0x4, fixed_abs, tag = 'smem constant byte address 0x4 - core index']
  #allocation1 [shape = 'u32[144,128]{1,0:T(1,128)}', space=vmem, size = 0x12000, scoped, tag = 'internal scratch']
  #allocation2 [shape = 'f32[1,128,128]{2,1,0:T(8,128)}', space=vmem, size = 0x10000, scoped, tag = 'scratch operand']
  #allocation3 [shape = 'f32[1,1,128]{2,1,0:T(1,128)}', space=vmem, size = 0x200, scoped, tag = 'scratch operand']
  %s0 = inlined_call_operand.hbm [shape: f32[4], index: 0, kind: input, shape index: {}]
  %s1 = inlined_call_operand.vmem [shape: f32[4], index: 1, kind: input, shape index: {}]
  %s2 = inlined_call_operand.hbm [shape: f32[2,128,128], index: 2, kind: input, shape index: {}]
  %s3 = inlined_call_operand.vmem [shape: f32[2,1,128], index: 3, kind: input, shape index: {}]
  %s4 = inlined_call_operand.vmem [shape: f32[2,1,128], index: 4, kind: input, shape index: {}]
  %s5 = inlined_call_operand.hbm [shape: f32[2,1,128], index: 5, kind: output, shape index: {}]
  %s6 = sld [smem:[#allocation0]]
  $region65: #{tpu_custom_call.1} parent=0
    _
  %s8 = ssub.s32 1, %s6
  %s9 = scalar_select 0, %s8, %s6
  $region1: #{tpu_custom_call.1} parent=0
    #allocation4 [shape = 'u8[512]{0}', space=smem, size = 0x200, scoped, tag = 'input window, operand 0, single buffered']
    #allocation5 [shape = 's32[2]{0}', space=sflag, size = 0x8, scoped, tag = 'scoped memory for tpu_custom_call.1']
    #allocation6 [shape = 's32[2]{0}', space=sflag, size = 0x8, scoped, tag = 'scoped memory for tpu_custom_call.1']
    #allocation7 [shape = 's32[2]{0}', space=sflag, size = 0x8, scoped, tag = 'scoped memory for tpu_custom_call.1']
    #allocation8 [shape = 's32[2]{0}', space=sflag, size = 0x8, scoped, tag = 'scoped memory for tpu_custom_call.1']
    #allocation9 [shape = 'u8[512]{0}', space=smem, size = 0x200, scoped, tag = 'input window, operand 1, single buffered']
    #allocation10 [shape = 'u8[131072]{0}', space=vmem, size = 0x20000, scoped, tag = 'input window, operand 2']
    #allocation11 [shape = 'u8[1024]{0}', space=vmem, size = 0x400, scoped, tag = 'output window, operand 0']
    %10 = vsyncpa [#allocation7], 0
    %11 = vsyncpa [#allocation8], 0
    %12 = vsyncpa [#allocation5], 0
    %s13 = scalar_lea.sflag [#allocation5], 1
    %14 = vsyncpa %s13, 0
    %15 = vsyncpa [#allocation6], 0
    %s16 = scalar_lea.sflag [#allocation6], 1
    %17 = vsyncpa %s16, 0
    loop: start=0, step=1, limit=4
    $region2: #{tpu_custom_call.1} parent=1 // loop_pre_header
      _
    $region3: #{tpu_custom_call.1} parent=1 // loop_header
      %s19 = sphi 0, %s23
      %p20 = scmp.ge.s32.totalorder %s19, 4
      %s27 = sphi 0, %s27
      %s29 = sphi 0, %s27
      %s30 = sphi 0, %s29
      %s44 = sphi 0, %s30
      %s48 = sphi 0, %s48
      %s50 = sphi 0, %s48
      %s51 = sphi 0, %s50
      %s65 = sphi 0, %s51
      %s71 = sphi 0, %s73
      %s74 = sphi 0, %s71
      %s75 = sphi 0, %s74
      %s91 = sphi 0, %s75
      %s97 = sphi 0, %s99
      %s100 = sphi 0, %s97
      %s101 = sphi 0, %s100
      %s117 = sphi 0, %s101
      %s123 = sphi 0, %s125
      %s126 = sphi 0, %s123
      %s127 = sphi 0, %s126
      %s143 = sphi 0, %s127
      %s149 = sphi 0, %s151
      %s152 = sphi 0, %s149
      %s153 = sphi 0, %s152
      %s169 = sphi 0, %s153
    $region4: #{tpu_custom_call.1} parent=1 // loop_header_branch
      %22 = sbr.rel (%p20) target = $region8
    $region5: #{tpu_custom_call.1} parent=1 // loop_body
      %s24 = ssub.s32 %s19, 1
      %s25 = ssub.s32 %s19, 2
      %s26 = sadd.s32 %s19, 1
      %s28 = sadd.s32 %s27, 1
      %p31 = scmp.eq.s32.totalorder %s19, 1
      %p32 = scmp.ne.s32.totalorder %s27, %s29
      %p33 = scmp.eq.s32.totalorder %s19, 0
      %p34 = por %p32, %p33
      %p35 = scmp.ne.s32.totalorder %s27, %s29
      %p36 = scmp.eq.s32.totalorder %s24, 1
      %p37 = por %p35, %p36
      %p38 = scmp.ne.s32.totalorder %s29, %s30
      %p39 = scmp.eq.s32.totalorder %s24, 0
      %p40 = por %p38, %p39
      %p41 = scmp.ne.s32.totalorder %s29, %s30
      %p42 = scmp.eq.s32.totalorder %s25, 1
      %p43 = por %p41, %p42
      %p45 = scmp.ne.s32.totalorder %s30, %s44
      %p46 = scmp.eq.s32.totalorder %s25, 0
      %p47 = por %p45, %p46
      %s49 = sadd.s32 %s48, 1
      %p52 = scmp.eq.s32.totalorder %s19, 1
      %p53 = scmp.ne.s32.totalorder %s48, %s50
      %p54 = scmp.eq.s32.totalorder %s19, 0
      %p55 = por %p53, %p54
      %p56 = scmp.ne.s32.totalorder %s48, %s50
      %p57 = scmp.eq.s32.totalorder %s24, 1
      %p58 = por %p56, %p57
      %p59 = scmp.ne.s32.totalorder %s50, %s51
      %p60 = scmp.eq.s32.totalorder %s24, 0
      %p61 = por %p59, %p60
      %p62 = scmp.ne.s32.totalorder %s50, %s51
      %p63 = scmp.eq.s32.totalorder %s25, 1
      %p64 = por %p62, %p63
      %p66 = scmp.ne.s32.totalorder %s51, %s65
      %p67 = scmp.eq.s32.totalorder %s25, 0
      %p68 = por %p66, %p67
      %s69 = ssub.s32 %s19, %s26
      %p70 = scmp.eq.s32.totalorder %s69, 0
      %s72 = sadd.s32 %s71, 1
      %s73 = scalar_select %p70, %s71, %s72
      %p76 = pneg %p70
      %p77 = scmp.eq.s32.totalorder %s19, 1
      %p78 = por %p76, %p77
      %p79 = scmp.ne.s32.totalorder %s71, %s74
      %p80 = scmp.eq.s32.totalorder %s19, 0
      %p81 = por %p79, %p80
      %p82 = scmp.ne.s32.totalorder %s71, %s74
      %p83 = scmp.eq.s32.totalorder %s24, 1
      %p84 = por %p82, %p83
      %p85 = scmp.ne.s32.totalorder %s74, %s75
      %p86 = scmp.eq.s32.totalorder %s24, 0
      %p87 = por %p85, %p86
      %p88 = scmp.ne.s32.totalorder %s74, %s75
      %p89 = scmp.eq.s32.totalorder %s25, 1
      %p90 = por %p88, %p89
      %p92 = scmp.ne.s32.totalorder %s75, %s91
      %p93 = scmp.eq.s32.totalorder %s25, 0
      %p94 = por %p92, %p93
      %s95 = ssub.s32 %s19, %s26
      %p96 = scmp.eq.s32.totalorder %s95, 0
      %s98 = sadd.s32 %s97, 1
      %s99 = scalar_select %p96, %s97, %s98
      %p102 = pneg %p96
      %p103 = scmp.eq.s32.totalorder %s19, 1
      %p104 = por %p102, %p103
      %p105 = scmp.ne.s32.totalorder %s97, %s100
      %p106 = scmp.eq.s32.totalorder %s19, 0
      %p107 = por %p105, %p106
      %p108 = scmp.ne.s32.totalorder %s97, %s100
      %p109 = scmp.eq.s32.totalorder %s24, 1
      %p110 = por %p108, %p109
      %p111 = scmp.ne.s32.totalorder %s100, %s101
      %p112 = scmp.eq.s32.totalorder %s24, 0
      %p113 = por %p111, %p112
      %p114 = scmp.ne.s32.totalorder %s100, %s101
      %p115 = scmp.eq.s32.totalorder %s25, 1
      %p116 = por %p114, %p115
      %p118 = scmp.ne.s32.totalorder %s101, %s117
      %p119 = scmp.eq.s32.totalorder %s25, 0
      %p120 = por %p118, %p119
      %s121 = ssub.s32 %s19, %s26
      %p122 = scmp.eq.s32.totalorder %s121, 0
      %s124 = sadd.s32 %s123, 1
      %s125 = scalar_select %p122, %s123, %s124
      %p128 = pneg %p122
      %p129 = scmp.eq.s32.totalorder %s19, 1
      %p130 = por %p128, %p129
      %p131 = scmp.ne.s32.totalorder %s123, %s126
      %p132 = scmp.eq.s32.totalorder %s19, 0
      %p133 = por %p131, %p132
      %p134 = scmp.ne.s32.totalorder %s123, %s126
      %p135 = scmp.eq.s32.totalorder %s24, 1
      %p136 = por %p134, %p135
      %p137 = scmp.ne.s32.totalorder %s126, %s127
      %p138 = scmp.eq.s32.totalorder %s24, 0
      %p139 = por %p137, %p138
      %p140 = scmp.ne.s32.totalorder %s126, %s127
      %p141 = scmp.eq.s32.totalorder %s25, 1
      %p142 = por %p140, %p141
      %p144 = scmp.ne.s32.totalorder %s127, %s143
      %p145 = scmp.eq.s32.totalorder %s25, 0
      %p146 = por %p144, %p145
      %s147 = ssub.s32 %s19, %s26
      %p148 = scmp.eq.s32.totalorder %s147, 0
      %s150 = sadd.s32 %s149, 1
      %s151 = scalar_select %p148, %s149, %s150
      %p154 = pneg %p148
      %p155 = scmp.eq.s32.totalorder %s19, 1
      %p156 = por %p154, %p155
      %p157 = scmp.ne.s32.totalorder %s149, %s152
      %p158 = scmp.eq.s32.totalorder %s19, 0
      %p159 = por %p157, %p158
      %p160 = scmp.ne.s32.totalorder %s149, %s152
      %p161 = scmp.eq.s32.totalorder %s24, 1
      %p162 = por %p160, %p161
      %p163 = scmp.ne.s32.totalorder %s152, %s153
      %p164 = scmp.eq.s32.totalorder %s24, 0
      %p165 = por %p163, %p164
      %p166 = scmp.ne.s32.totalorder %s152, %s153
      %p167 = scmp.eq.s32.totalorder %s25, 1
      %p168 = por %p166, %p167
      %p170 = scmp.ne.s32.totalorder %s153, %s169
      %p171 = scmp.eq.s32.totalorder %s25, 0
      %p172 = por %p170, %p171
      %p173 = scmp.le.s32.totalorder 1, %s19
      %p174 = scmp.lt.s32.totalorder %s19, 3
      %p175 = pnand %p173, %p174
      %p176 = pneg %p175
      // Predicated region
      $region9: #{tpu_custom_call.1} parent=5 // pred_check
        _
      $region10: #{tpu_custom_call.1} parent=5 // pred_check_branch
        %178 = sbr.rel (%p175) target = $region12
      $region11: #{tpu_custom_call.1} parent=5 // pred_region
        %s179 = ssub.s32 %s19, 1
        // Predicated region
        $region13: #{tpu_custom_call.1} parent=11 // pred_check
          %p180 = pneg %p40
        $region14: #{tpu_custom_call.1} parent=11 // pred_check_branch
          %182 = sbr.rel (%p180) target = $region16
        $region15: #{tpu_custom_call.1} parent=11 // pred_region
          %s184 = ssub.s32 16, 16
          %185 = vsyncadd [#allocation7], %s184
          %188 = dma.hbm_to_smem %s0, 16, [#allocation4], [#allocation7]
        $region16: #{tpu_custom_call.1} parent=11 // pred_fallthru
          _
        // Predicated region
        $region17: #{tpu_custom_call.1} parent=11 // pred_check
          %p189 = pneg %p61
        $region18: #{tpu_custom_call.1} parent=11 // pred_check_branch
          %191 = sbr.rel (%p189) target = $region20
        $region19: #{tpu_custom_call.1} parent=11 // pred_region
          %s193 = ssub.s32 16, 16
          %194 = vsyncadd [#allocation8], %s193
          %s196 = sshll.u32 %s1, 4
          %s197 = int_to_ptr.vmem [resolvable:$true] %s196
          %199 = dma.vmem_to_smem %s197, 16, [#allocation9], [#allocation8]
        $region20: #{tpu_custom_call.1} parent=11 // pred_fallthru
          _
      $region12: #{tpu_custom_call.1} parent=5 // pred_fallthru
        _
      %p200 = scmp.lt.s32.totalorder %s19, 2
      // Predicated region
      $region21: #{tpu_custom_call.1} parent=5 // pred_check
        %p201 = pneg %p200
      $region22: #{tpu_custom_call.1} parent=5 // pred_check_branch
        %203 = sbr.rel (%p201) target = $region24
      $region23: #{tpu_custom_call.1} parent=5 // pred_region
        // Predicated region
        $region25: #{tpu_custom_call.1} parent=23 // pred_check
          %p204 = pneg %p81
        $region26: #{tpu_custom_call.1} parent=23 // pred_check_branch
          %206 = sbr.rel (%p204) target = $region28
        $region27: #{tpu_custom_call.1} parent=23 // pred_region
          %s207 = sand.u32 %s71, 1
          %s208 = scalar_lea.sflag [#allocation5], %s207
          %s209 = sand.u32 %s71, 1
          %s210 = smul.addr %s209, 128
          %s211 = scalar_lea.vmem [#allocation10], %s210
          %s213 = ssub.s32 2048, 2048
          %214 = vsyncadd %s208, %s213
          %s215 = smul.addr %s19, 16
          %s216 = smul.addr %s215, 128
          %s217 = scalar_lea.hbm %s2, %s216
          %s218 = sshll.u32 %s211, 4
          %s219 = int_to_ptr.vmem [resolvable:$true] %s218
          %224 = dma.hbm_to_vmem [thread:$0]  %s217, 2048, %s219, %s208, 128, 128, 8
        $region28: #{tpu_custom_call.1} parent=23 // pred_fallthru
          _
        // Predicated region
        $region29: #{tpu_custom_call.1} parent=23 // pred_check
          %p225 = pneg %p107
        $region30: #{tpu_custom_call.1} parent=23 // pred_check_branch
          %227 = sbr.rel (%p225) target = $region32
        $region31: #{tpu_custom_call.1} parent=23 // pred_region
          %p228 = scmp.lt.s32.totalorder %s19, 1
          %s229 = scalar_select %p228, %s19, 1
          %s230 = scalar_lea.vmem %s3, %s229
        $region32: #{tpu_custom_call.1} parent=23 // pred_fallthru
          _
        // Predicated region
        $region33: #{tpu_custom_call.1} parent=23 // pred_check
          %p231 = pneg %p133
        $region34: #{tpu_custom_call.1} parent=23 // pred_check_branch
          %233 = sbr.rel (%p231) target = $region36
        $region35: #{tpu_custom_call.1} parent=23 // pred_region
          %p234 = scmp.lt.s32.totalorder %s19, 1
          %s235 = scalar_select %p234, %s19, 1
          %s236 = scalar_lea.vmem %s4, %s235
        $region36: #{tpu_custom_call.1} parent=23 // pred_fallthru
          _
      $region24: #{tpu_custom_call.1} parent=5 // pred_fallthru
        _
      %p237 = scmp.le.s32.totalorder 1, %s19
      %p238 = scmp.lt.s32.totalorder %s19, 3
      %p239 = pnand %p237, %p238
      %p240 = pneg %p239
      // Predicated region
      $region37: #{tpu_custom_call.1} parent=5 // pred_check
        _
      $region38: #{tpu_custom_call.1} parent=5 // pred_check_branch
        %242 = sbr.rel (%p239) target = $region40
      $region39: #{tpu_custom_call.1} parent=5 // pred_region
        %s243 = ssub.s32 %s19, 1
        // Predicated region
        $region41: #{tpu_custom_call.1} parent=39 // pred_check
          %p244 = pneg %p40
        $region42: #{tpu_custom_call.1} parent=39 // pred_check_branch
          %246 = sbr.rel (%p244) target = $region44
        $region43: #{tpu_custom_call.1} parent=39 // pred_region
          %247 = dma.done [#allocation7], 16
        $region44: #{tpu_custom_call.1} parent=39 // pred_fallthru
          _
        // Predicated region
        $region45: #{tpu_custom_call.1} parent=39 // pred_check
          %p248 = pneg %p61
        $region46: #{tpu_custom_call.1} parent=39 // pred_check_branch
          %250 = sbr.rel (%p248) target = $region48
        $region47: #{tpu_custom_call.1} parent=39 // pred_region
          %251 = dma.done [#allocation8], 16
        $region48: #{tpu_custom_call.1} parent=39 // pred_fallthru
          _
        %s252 = sand.u32 %s74, 1
        %s253 = scalar_lea.sflag [#allocation5], %s252
        %s254 = sand.u32 %s74, 1
        %s255 = smul.addr %s254, 128
        %s256 = scalar_lea.vmem [#allocation10], %s255
        // Predicated region
        $region49: #{tpu_custom_call.1} parent=39 // pred_check
          %p257 = pneg %p87
        $region50: #{tpu_custom_call.1} parent=39 // pred_check_branch
          %259 = sbr.rel (%p257) target = $region52
        $region51: #{tpu_custom_call.1} parent=39 // pred_region
          %260 = dma.done %s253, 2048
        $region52: #{tpu_custom_call.1} parent=39 // pred_fallthru
          _
        %261 = sfence
        %p262 = pneg %p40
        %p263 = pneg %p37
        %p264 = pneg %p61
        %p265 = pneg %p58
        %s266 = sand.u32 %s74, 1
        %s267 = scalar_lea.sflag [#allocation5], %s266
        %s268 = sand.u32 %s74, 1
        %s269 = smul.addr %s268, 128
        %s270 = scalar_lea.vmem [#allocation10], %s269
        %p271 = pneg %p87
        %p272 = pneg %p84
        %p273 = scmp.lt.s32.totalorder %s24, 1
        %s274 = scalar_select %p273, %s24, 1
        %s275 = scalar_lea.vmem %s3, %s274
        %p276 = pneg %p113
        %p277 = pneg %p110
        %p278 = scmp.lt.s32.totalorder %s24, 1
        %s279 = scalar_select %p278, %s24, 1
        %s280 = scalar_lea.vmem %s4, %s279
        %p281 = pneg %p139
        %p282 = pneg %p136
        %p283 = pneg %p165
        %p284 = pneg %p162
        %s285 = sand.u32 %s152, 1
        %s286 = scalar_lea.sflag [#allocation6], %s285
        %s287 = sand.u32 %s152, 1
        %s288 = scalar_lea.vmem [#allocation11], %s287
        %p289 = scmp.lt.s32.totalorder %s24, 1
        %s290 = scalar_select %p289, %s24, 1
        %s291 = scalar_lea.vmem %s3, %s290
        %p292 = scmp.lt.s32.totalorder %s24, 1
        %s293 = scalar_select %p292, %s24, 1
        %s294 = scalar_lea.vmem %s4, %s293
        %v295 = vld [vmem:[%s256] sm:$0xff]
        %v296 = vld [vmem:[%s256 + $0x8] sm:$0xff]
        %v297 = vld [vmem:[%s256 + $0x10] sm:$0xff]
        %v298 = vld [vmem:[%s256 + $0x18] sm:$0xff]
        %v299 = vld [vmem:[%s256 + $0x20] sm:$0xff]
        %v300 = vld [vmem:[%s256 + $0x28] sm:$0xff]
        %v301 = vld [vmem:[%s256 + $0x30] sm:$0xff]
        %v302 = vld [vmem:[%s256 + $0x38] sm:$0xff]
        %v303 = vld [vmem:[%s256 + $0x40] sm:$0xff]
        %v304 = vld [vmem:[%s256 + $0x48] sm:$0xff]
        %v305 = vld [vmem:[%s256 + $0x50] sm:$0xff]
        %v306 = vld [vmem:[%s256 + $0x58] sm:$0xff]
        %v307 = vld [vmem:[%s256 + $0x60] sm:$0xff]
        %v308 = vld [vmem:[%s256 + $0x68] sm:$0xff]
        %v309 = vld [vmem:[%s256 + $0x70] sm:$0xff]
        %v310 = vld [vmem:[%s256 + $0x78] sm:$0xff]
        %v311 = vld [vmem:[%s294] sm:$0x1]
        %312 = vmatprep.subr.mxu0 0.0
        %313 = vmatpush1.xpose.msra.mxu0 %v295
        %314 = vmatprep.subr.mxu0 0.0
        %315 = vmatpush1.xpose.msra.mxu0 %v296
        %316 = vmatprep.subr.mxu0 0.0
        %317 = vmatpush1.xpose.msra.mxu0 %v297
        %318 = vmatprep.subr.mxu0 0.0
        %319 = vmatpush1.xpose.msra.mxu0 %v298
        %320 = vmatprep.subr.mxu0 0.0
        %321 = vmatpush1.xpose.msra.mxu0 %v299
        %322 = vmatprep.subr.mxu0 0.0
        %323 = vmatpush1.xpose.msra.mxu0 %v300
        %324 = vmatprep.subr.mxu0 0.0
        %325 = vmatpush1.xpose.msra.mxu0 %v301
        %326 = vmatprep.subr.mxu0 0.0
        %327 = vmatpush1.xpose.msra.mxu0 %v302
        %328 = vmatprep.subr.mxu0 0.0
        %329 = vmatpush1.xpose.msra.mxu0 %v303
        %330 = vmatprep.subr.mxu0 0.0
        %331 = vmatpush1.xpose.msra.mxu0 %v304
        %332 = vmatprep.subr.mxu0 0.0
        %333 = vmatpush1.xpose.msra.mxu0 %v305
        %334 = vmatprep.subr.mxu0 0.0
        %335 = vmatpush1.xpose.msra.mxu0 %v306
        %336 = vmatprep.subr.mxu0 0.0
        %337 = vmatpush1.xpose.msra.mxu0 %v307
        %338 = vmatprep.subr.mxu0 0.0
        %339 = vmatpush1.xpose.msra.mxu0 %v308
        %340 = vmatprep.subr.mxu0 0.0
        %341 = vmatpush1.xpose.msra.mxu0 %v309
        %342 = vmatprep.subr.mxu0 0.0
        %343 = vmatpush1.xpose.msra.mxu0 %v310
        %344 = vmatprep.subr.mxu0 0.0
        %345 = vmatpush1.xpose.msra.mxu0 0.0
        %346 = vmatprep.subr.mxu0 0.0
        %347 = vmatpush1.xpose.msra.mxu0 0.0
        %348 = vmatprep.subr.mxu0 0.0
        %349 = vmatpush1.xpose.msra.mxu0 0.0
        %350 = vmatprep.subr.mxu0 0.0
        %351 = vmatpush1.xpose.msra.mxu0 0.0
        %352 = vmatprep.subr.mxu0 0.0
        %353 = vmatpush1.xpose.msra.mxu0 0.0
        %354 = vmatprep.subr.mxu0 0.0
        %355 = vmatpush1.xpose.msra.mxu0 0.0
        %356 = vmatprep.subr.mxu0 0.0
        %357 = vmatpush1.xpose.msra.mxu0 0.0
        %358 = vmatprep.subr.mxu0 0.0
        %359 = vmatpush1.xpose.msra.mxu0 0.0
        %360 = vmatprep.subr.mxu0 0.0
        %361 = vmatpush1.xpose.msra.mxu0 0.0
        %362 = vmatprep.subr.mxu0 0.0
        %363 = vmatpush1.xpose.msra.mxu0 0.0
        %364 = vmatprep.subr.mxu0 0.0
        %365 = vmatpush1.xpose.msra.mxu0 0.0
        %366 = vmatprep.subr.mxu0 0.0
        %367 = vmatpush1.xpose.msra.mxu0 0.0
        %368 = vmatprep.subr.mxu0 0.0
        %369 = vmatpush1.xpose.msra.mxu0 0.0
        %370 = vmatprep.subr.mxu0 0.0
        %371 = vmatpush1.xpose.msra.mxu0 0.0
        %372 = vmatprep.subr.mxu0 0.0
        %373 = vmatpush1.xpose.msra.mxu0 0.0
        %374 = vmatprep.subr.mxu0 0.0
        %375 = vmatpush1.xpose.msra.mxu0 0.0
        %376 = vmatprep.mubr.f32.mxu0 0.0
        %377 = vmatmul.mubr.f32.gmra.mrb[0].mxu0 %v295
        %v378 = vpop.f32.mrb[0].mxu0
        %v379 = vadd.f32 0.0, %v378
        %v380 = vpop.f32.mrb[0].mxu0
        %381 = vmatprep.mubr.f32.mxu0 0.0
        %382 = vmatmul.mubr.f32.gmra.mrb[0].mxu0 %v296
        %v383 = vpop.f32.mrb[0].mxu0
        %v384 = vadd.f32 0.0, %v383
        %v385 = vpop.f32.mrb[0].mxu0
        %386 = vmatprep.mubr.f32.mxu0 0.0
        %387 = vmatmul.mubr.f32.gmra.mrb[0].mxu0 %v297
        %v388 = vpop.f32.mrb[0].mxu0
        %v389 = vadd.f32 0.0, %v388
        %v390 = vpop.f32.mrb[0].mxu0
        %391 = vmatprep.mubr.f32.mxu0 0.0
        %392 = vmatmul.mubr.f32.gmra.mrb[0].mxu0 %v298
        %v393 = vpop.f32.mrb[0].mxu0
        %v394 = vadd.f32 0.0, %v393
        %v395 = vpop.f32.mrb[0].mxu0
        %396 = vmatprep.mubr.f32.mxu0 0.0
        %397 = vmatmul.mubr.f32.gmra.mrb[0].mxu0 %v299
        %v398 = vpop.f32.mrb[0].mxu0
        %v399 = vadd.f32 0.0, %v398
        %v400 = vpop.f32.mrb[0].mxu0
        %401 = vmatprep.mubr.f32.mxu0 0.0
        %402 = vmatmul.mubr.f32.gmra.mrb[0].mxu0 %v300
        %v403 = vpop.f32.mrb[0].mxu0
        %v404 = vadd.f32 0.0, %v403
        %v405 = vpop.f32.mrb[0].mxu0
        %406 = vmatprep.mubr.f32.mxu0 0.0
        %407 = vmatmul.mubr.f32.gmra.mrb[0].mxu0 %v301
        %v408 = vpop.f32.mrb[0].mxu0
        %v409 = vadd.f32 0.0, %v408
        %v410 = vpop.f32.mrb[0].mxu0
        %411 = vmatprep.mubr.f32.mxu0 0.0
        %412 = vmatmul.mubr.f32.gmra.mrb[0].mxu0 %v302
        %v413 = vpop.f32.mrb[0].mxu0
        %v414 = vadd.f32 0.0, %v413
        %v415 = vpop.f32.mrb[0].mxu0
        %416 = vmatprep.mubr.f32.mxu0 0.0
        %417 = vmatmul.mubr.f32.gmra.mrb[0].mxu0 %v303
        %v418 = vpop.f32.mrb[0].mxu0
        %v419 = vadd.f32 0.0, %v418
        %v420 = vpop.f32.mrb[0].mxu0
        %421 = vmatprep.mubr.f32.mxu0 0.0
        %422 = vmatmul.mubr.f32.gmra.mrb[0].mxu0 %v304
        %v423 = vpop.f32.mrb[0].mxu0
        %v424 = vadd.f32 0.0, %v423
        %v425 = vpop.f32.mrb[0].mxu0
        %426 = vmatprep.mubr.f32.mxu0 0.0
        %427 = vmatmul.mubr.f32.gmra.mrb[0].mxu0 %v305
        %v428 = vpop.f32.mrb[0].mxu0
        %v429 = vadd.f32 0.0, %v428
        %v430 = vpop.f32.mrb[0].mxu0
        %431 = vmatprep.mubr.f32.mxu0 0.0
        %432 = vmatmul.mubr.f32.gmra.mrb[0].mxu0 %v306
        %v433 = vpop.f32.mrb[0].mxu0
        %v434 = vadd.f32 0.0, %v433
        %v435 = vpop.f32.mrb[0].mxu0
        %436 = vmatprep.mubr.f32.mxu0 0.0
        %437 = vmatmul.mubr.f32.gmra.mrb[0].mxu0 %v307
        %v438 = vpop.f32.mrb[0].mxu0
        %v439 = vadd.f32 0.0, %v438
        %v440 = vpop.f32.mrb[0].mxu0
        %441 = vmatprep.mubr.f32.mxu0 0.0
        %442 = vmatmul.mubr.f32.gmra.mrb[0].mxu0 %v308
        %v443 = vpop.f32.mrb[0].mxu0
        %v444 = vadd.f32 0.0, %v443
        %v445 = vpop.f32.mrb[0].mxu0
        %446 = vmatprep.mubr.f32.mxu0 0.0
        %447 = vmatmul.mubr.f32.gmra.mrb[0].mxu0 %v309
        %v448 = vpop.f32.mrb[0].mxu0
        %v449 = vadd.f32 0.0, %v448
        %v450 = vpop.f32.mrb[0].mxu0
        %451 = vmatprep.mubr.f32.mxu0 0.0
        %452 = vmatmul.mubr.f32.gmra.mrb[0].mxu0 %v310
        %v453 = vpop.f32.mrb[0].mxu0
        %v454 = vadd.f32 0.0, %v453
        %v455 = vpop.f32.mrb[0].mxu0
        %456 = vdwg.mxu0
        %457 = vst [vmem:[#allocation2] sm:$0xff] %v379
        %458 = vst [vmem:[#allocation2 + $0x8] sm:$0xff] %v384
        %459 = vst [vmem:[#allocation2 + $0x10] sm:$0xff] %v389
        %460 = vst [vmem:[#allocation2 + $0x18] sm:$0xff] %v394
        %461 = vst [vmem:[#allocation2 + $0x20] sm:$0xff] %v399
        %462 = vst [vmem:[#allocation2 + $0x28] sm:$0xff] %v404
        %463 = vst [vmem:[#allocation2 + $0x30] sm:$0xff] %v409
        %464 = vst [vmem:[#allocation2 + $0x38] sm:$0xff] %v414
        %465 = vst [vmem:[#allocation2 + $0x40] sm:$0xff] %v419
        %466 = vst [vmem:[#allocation2 + $0x48] sm:$0xff] %v424
        %467 = vst [vmem:[#allocation2 + $0x50] sm:$0xff] %v429
        %468 = vst [vmem:[#allocation2 + $0x58] sm:$0xff] %v434
        %469 = vst [vmem:[#allocation2 + $0x60] sm:$0xff] %v439
        %470 = vst [vmem:[#allocation2 + $0x68] sm:$0xff] %v444
        %471 = vst [vmem:[#allocation2 + $0x70] sm:$0xff] %v449
        %472 = vst [vmem:[#allocation2 + $0x78] sm:$0xff] %v454
        %473 = vmatprep.subr.mxu0 0.0
        %474 = vmatpush1.xpose.msra.mxu0 %v295
        %475 = vmatprep.subr.mxu0 0.0
        %476 = vmatpush1.xpose.msra.mxu0 %v296
        %477 = vmatprep.subr.mxu0 0.0
        %478 = vmatpush1.xpose.msra.mxu0 %v297
        %479 = vmatprep.subr.mxu0 0.0
        %480 = vmatpush1.xpose.msra.mxu0 %v298
        %481 = vmatprep.subr.mxu0 0.0
        %482 = vmatpush1.xpose.msra.mxu0 %v299
        %483 = vmatprep.subr.mxu0 0.0
        %484 = vmatpush1.xpose.msra.mxu0 %v300
        %485 = vmatprep.subr.mxu0 0.0
        %486 = vmatpush1.xpose.msra.mxu0 %v301
        %487 = vmatprep.subr.mxu0 0.0
        %488 = vmatpush1.xpose.msra.mxu0 %v302
        %489 = vmatprep.subr.mxu0 0.0
        %490 = vmatpush1.xpose.msra.mxu0 %v303
        %491 = vmatprep.subr.mxu0 0.0
        %492 = vmatpush1.xpose.msra.mxu0 %v304
        %493 = vmatprep.subr.mxu0 0.0
        %494 = vmatpush1.xpose.msra.mxu0 %v305
        %495 = vmatprep.subr.mxu0 0.0
        %496 = vmatpush1.xpose.msra.mxu0 %v306
        %497 = vmatprep.subr.mxu0 0.0
        %498 = vmatpush1.xpose.msra.mxu0 %v307
        %499 = vmatprep.subr.mxu0 0.0
        %500 = vmatpush1.xpose.msra.mxu0 %v308
        %501 = vmatprep.subr.mxu0 0.0
        %502 = vmatpush1.xpose.msra.mxu0 %v309
        %503 = vmatprep.subr.mxu0 0.0
        %504 = vmatpush1.xpose.msra.mxu0 %v310
        %505 = vmatprep.subr.mxu0 0.0
        %506 = vmatpush1.xpose.msra.mxu0 0.0
        %507 = vmatprep.subr.mxu0 0.0
        %508 = vmatpush1.xpose.msra.mxu0 0.0
        %509 = vmatprep.subr.mxu0 0.0
        %510 = vmatpush1.xpose.msra.mxu0 0.0
        %511 = vmatprep.subr.mxu0 0.0
        %512 = vmatpush1.xpose.msra.mxu0 0.0
        %513 = vmatprep.subr.mxu0 0.0
        %514 = vmatpush1.xpose.msra.mxu0 0.0
        %515 = vmatprep.subr.mxu0 0.0
        %516 = vmatpush1.xpose.msra.mxu0 0.0
        %517 = vmatprep.subr.mxu0 0.0
        %518 = vmatpush1.xpose.msra.mxu0 0.0
        %519 = vmatprep.subr.mxu0 0.0
        %520 = vmatpush1.xpose.msra.mxu0 0.0
        %521 = vmatprep.subr.mxu0 0.0
        %522 = vmatpush1.xpose.msra.mxu0 0.0
        %523 = vmatprep.subr.mxu0 0.0
        %524 = vmatpush1.xpose.msra.mxu0 0.0
        %525 = vmatprep.subr.mxu0 0.0
        %526 = vmatpush1.xpose.msra.mxu0 0.0
        %527 = vmatprep.subr.mxu0 0.0
        %528 = vmatpush1.xpose.msra.mxu0 0.0
        %529 = vmatprep.subr.mxu0 0.0
        %530 = vmatpush1.xpose.msra.mxu0 0.0
        %531 = vmatprep.subr.mxu0 0.0
        %532 = vmatpush1.xpose.msra.mxu0 0.0
        %533 = vmatprep.subr.mxu0 0.0
        %534 = vmatpush1.xpose.msra.mxu0 0.0
        %535 = vmatprep.subr.mxu0 0.0
        %536 = vmatpush1.xpose.msra.mxu0 0.0
        %537 = vmatprep.mubr.f32.mxu0 0.0
        %538 = vmatmul.mubr.f32.gmra.mrb[0].mxu0 %v311
        %v539 = vpop.f32.mrb[0].mxu0
        %v540 = vadd.f32 0.0, %v539
        %v541 = vpop.f32.mrb[0].mxu0
        %542 = vdwg.mxu0
        %543 = vst [vmem:[#allocation3] sm:$0x1] %v540
        %v544 = vld [vmem:[%s291] sm:$0x1]
        %s545 = sld [smem:[#allocation4]]
        %s546 = sld [smem:[#allocation9]]
        %s547 = smul.f32 %s545, %s546
        %v548 = vld [vmem:[#allocation2] sm:$0xff]
        %v549 = vld [vmem:[#allocation2 + $0x8] sm:$0xff]
        %v550 = vld [vmem:[#allocation2 + $0x10] sm:$0xff]
        %v551 = vld [vmem:[#allocation2 + $0x18] sm:$0xff]
        %v552 = vld [vmem:[#allocation2 + $0x20] sm:$0xff]
        %v553 = vld [vmem:[#allocation2 + $0x28] sm:$0xff]
        %v554 = vld [vmem:[#allocation2 + $0x30] sm:$0xff]
        %v555 = vld [vmem:[#allocation2 + $0x38] sm:$0xff]
        %v556 = vld [vmem:[#allocation2 + $0x40] sm:$0xff]
        %v557 = vld [vmem:[#allocation2 + $0x48] sm:$0xff]
        %v558 = vld [vmem:[#allocation2 + $0x50] sm:$0xff]
        %v559 = vld [vmem:[#allocation2 + $0x58] sm:$0xff]
        %v560 = vld [vmem:[#allocation2 + $0x60] sm:$0xff]
        %v561 = vld [vmem:[#allocation2 + $0x68] sm:$0xff]
        %v562 = vld [vmem:[#allocation2 + $0x70] sm:$0xff]
        %v563 = vld [vmem:[#allocation2 + $0x78] sm:$0xff]
        %564 = vmatprep.subr.mxu0 0.0
        %565 = vmatpush1.xpose.msra.mxu0 %v548
        %566 = vmatprep.subr.mxu0 0.0
        %567 = vmatpush1.xpose.msra.mxu0 %v549
        %568 = vmatprep.subr.mxu0 0.0
        %569 = vmatpush1.xpose.msra.mxu0 %v550
        %570 = vmatprep.subr.mxu0 0.0
        %571 = vmatpush1.xpose.msra.mxu0 %v551
        %572 = vmatprep.subr.mxu0 0.0
        %573 = vmatpush1.xpose.msra.mxu0 %v552
        %574 = vmatprep.subr.mxu0 0.0
        %575 = vmatpush1.xpose.msra.mxu0 %v553
        %576 = vmatprep.subr.mxu0 0.0
        %577 = vmatpush1.xpose.msra.mxu0 %v554
        %578 = vmatprep.subr.mxu0 0.0
        %579 = vmatpush1.xpose.msra.mxu0 %v555
        %580 = vmatprep.subr.mxu0 0.0
        %581 = vmatpush1.xpose.msra.mxu0 %v556
        %582 = vmatprep.subr.mxu0 0.0
        %583 = vmatpush1.xpose.msra.mxu0 %v557
        %584 = vmatprep.subr.mxu0 0.0
        %585 = vmatpush1.xpose.msra.mxu0 %v558
        %586 = vmatprep.subr.mxu0 0.0
        %587 = vmatpush1.xpose.msra.mxu0 %v559
        %588 = vmatprep.subr.mxu0 0.0
        %589 = vmatpush1.xpose.msra.mxu0 %v560
        %590 = vmatprep.subr.mxu0 0.0
        %591 = vmatpush1.xpose.msra.mxu0 %v561
        %592 = vmatprep.subr.mxu0 0.0
        %593 = vmatpush1.xpose.msra.mxu0 %v562
        %594 = vmatprep.subr.mxu0 0.0
        %595 = vmatpush1.xpose.msra.mxu0 %v563
        %596 = vmatprep.subr.mxu0 0.0
        %597 = vmatpush1.xpose.msra.mxu0 0.0
        %598 = vmatprep.subr.mxu0 0.0
        %599 = vmatpush1.xpose.msra.mxu0 0.0
        %600 = vmatprep.subr.mxu0 0.0
        %601 = vmatpush1.xpose.msra.mxu0 0.0
        %602 = vmatprep.subr.mxu0 0.0
        %603 = vmatpush1.xpose.msra.mxu0 0.0
        %604 = vmatprep.subr.mxu0 0.0
        %605 = vmatpush1.xpose.msra.mxu0 0.0
        %606 = vmatprep.subr.mxu0 0.0
        %607 = vmatpush1.xpose.msra.mxu0 0.0
        %608 = vmatprep.subr.mxu0 0.0
        %609 = vmatpush1.xpose.msra.mxu0 0.0
        %610 = vmatprep.subr.mxu0 0.0
        %611 = vmatpush1.xpose.msra.mxu0 0.0
        %612 = vmatprep.subr.mxu0 0.0
        %613 = vmatpush1.xpose.msra.mxu0 0.0
        %614 = vmatprep.subr.mxu0 0.0
        %615 = vmatpush1.xpose.msra.mxu0 0.0
        %616 = vmatprep.subr.mxu0 0.0
        %617 = vmatpush1.xpose.msra.mxu0 0.0
        %618 = vmatprep.subr.mxu0 0.0
        %619 = vmatpush1.xpose.msra.mxu0 0.0
        %620 = vmatprep.subr.mxu0 0.0
        %621 = vmatpush1.xpose.msra.mxu0 0.0
        %622 = vmatprep.subr.mxu0 0.0
        %623 = vmatpush1.xpose.msra.mxu0 0.0
        %624 = vmatprep.subr.mxu0 0.0
        %625 = vmatpush1.xpose.msra.mxu0 0.0
        %626 = vmatprep.subr.mxu0 0.0
        %627 = vmatpush1.xpose.msra.mxu0 0.0
        %628 = vmatprep.mubr.f32.mxu0 0.0
        %629 = vmatmul.mubr.f32.gmra.mrb[0].mxu0 %v544
        %v630 = vpop.f32.mrb[0].mxu0
        %v631 = vadd.f32 0.0, %v630
        %v632 = vpop.f32.mrb[0].mxu0
        %633 = vdwg.mxu0
        %v634 = vld [vmem:[#allocation3] sm:$0x1]
        %v635 = vsub.f32 %v631, %v634
        %v636 = vstv %s545
        %v637 = vmul.f32 %v636, %v635
        %v638 = vsub.f32 %v544, %v637
        %s639 = ssub.f32 0.0, %s547
        %v640 = vstv %s639
        %v641 = vmax.f32 %v640, %v638
        %v642 = vstv %s547
        %v643 = vmin.f32 %v642, %v641
        %v644 = vsub.f32 %v638, %v643
        %s645 = sld [smem:[#allocation4 + $0x1]]
        %s646 = sld [smem:[#allocation9 + $0x1]]
        %s647 = smul.f32 %s645, %s646
        %v648 = vld [vmem:[#allocation2] sm:$0xff]
        %v649 = vld [vmem:[#allocation2 + $0x8] sm:$0xff]
        %v650 = vld [vmem:[#allocation2 + $0x10] sm:$0xff]
        %v651 = vld [vmem:[#allocation2 + $0x18] sm:$0xff]
        %v652 = vld [vmem:[#allocation2 + $0x20] sm:$0xff]
        %v653 = vld [vmem:[#allocation2 + $0x28] sm:$0xff]
        %v654 = vld [vmem:[#allocation2 + $0x30] sm:$0xff]
        %v655 = vld [vmem:[#allocation2 + $0x38] sm:$0xff]
        %v656 = vld [vmem:[#allocation2 + $0x40] sm:$0xff]
        %v657 = vld [vmem:[#allocation2 + $0x48] sm:$0xff]
        %v658 = vld [vmem:[#allocation2 + $0x50] sm:$0xff]
        %v659 = vld [vmem:[#allocation2 + $0x58] sm:$0xff]
        %v660 = vld [vmem:[#allocation2 + $0x60] sm:$0xff]
        %v661 = vld [vmem:[#allocation2 + $0x68] sm:$0xff]
        %v662 = vld [vmem:[#allocation2 + $0x70] sm:$0xff]
        %v663 = vld [vmem:[#allocation2 + $0x78] sm:$0xff]
        %664 = vmatprep.subr.mxu0 0.0
        %665 = vmatpush1.xpose.msra.mxu0 %v648
        %666 = vmatprep.subr.mxu0 0.0
        %667 = vmatpush1.xpose.msra.mxu0 %v649
        %668 = vmatprep.subr.mxu0 0.0
        %669 = vmatpush1.xpose.msra.mxu0 %v650
        %670 = vmatprep.subr.mxu0 0.0
        %671 = vmatpush1.xpose.msra.mxu0 %v651
        %672 = vmatprep.subr.mxu0 0.0
        %673 = vmatpush1.xpose.msra.mxu0 %v652
        %674 = vmatprep.subr.mxu0 0.0
        %675 = vmatpush1.xpose.msra.mxu0 %v653
        %676 = vmatprep.subr.mxu0 0.0
        %677 = vmatpush1.xpose.msra.mxu0 %v654
        %678 = vmatprep.subr.mxu0 0.0
        %679 = vmatpush1.xpose.msra.mxu0 %v655
        %680 = vmatprep.subr.mxu0 0.0
        %681 = vmatpush1.xpose.msra.mxu0 %v656
        %682 = vmatprep.subr.mxu0 0.0
        %683 = vmatpush1.xpose.msra.mxu0 %v657
        %684 = vmatprep.subr.mxu0 0.0
        %685 = vmatpush1.xpose.msra.mxu0 %v658
        %686 = vmatprep.subr.mxu0 0.0
        %687 = vmatpush1.xpose.msra.mxu0 %v659
        %688 = vmatprep.subr.mxu0 0.0
        %689 = vmatpush1.xpose.msra.mxu0 %v660
        %690 = vmatprep.subr.mxu0 0.0
        %691 = vmatpush1.xpose.msra.mxu0 %v661
        %692 = vmatprep.subr.mxu0 0.0
        %693 = vmatpush1.xpose.msra.mxu0 %v662
        %694 = vmatprep.subr.mxu0 0.0
        %695 = vmatpush1.xpose.msra.mxu0 %v663
        %696 = vmatprep.subr.mxu0 0.0
        %697 = vmatpush1.xpose.msra.mxu0 0.0
        %698 = vmatprep.subr.mxu0 0.0
        %699 = vmatpush1.xpose.msra.mxu0 0.0
        %700 = vmatprep.subr.mxu0 0.0
        %701 = vmatpush1.xpose.msra.mxu0 0.0
        %702 = vmatprep.subr.mxu0 0.0
        %703 = vmatpush1.xpose.msra.mxu0 0.0
        %704 = vmatprep.subr.mxu0 0.0
        %705 = vmatpush1.xpose.msra.mxu0 0.0
        %706 = vmatprep.subr.mxu0 0.0
        %707 = vmatpush1.xpose.msra.mxu0 0.0
        %708 = vmatprep.subr.mxu0 0.0
        %709 = vmatpush1.xpose.msra.mxu0 0.0
        %710 = vmatprep.subr.mxu0 0.0
        %711 = vmatpush1.xpose.msra.mxu0 0.0
        %712 = vmatprep.subr.mxu0 0.0
        %713 = vmatpush1.xpose.msra.mxu0 0.0
        %714 = vmatprep.subr.mxu0 0.0
        %715 = vmatpush1.xpose.msra.mxu0 0.0
        %716 = vmatprep.subr.mxu0 0.0
        %717 = vmatpush1.xpose.msra.mxu0 0.0
        %718 = vmatprep.subr.mxu0 0.0
        %719 = vmatpush1.xpose.msra.mxu0 0.0
        %720 = vmatprep.subr.mxu0 0.0
        %721 = vmatpush1.xpose.msra.mxu0 0.0
        %722 = vmatprep.subr.mxu0 0.0
        %723 = vmatpush1.xpose.msra.mxu0 0.0
        %724 = vmatprep.subr.mxu0 0.0
        %725 = vmatpush1.xpose.msra.mxu0 0.0
        %726 = vmatprep.subr.mxu0 0.0
        %727 = vmatpush1.xpose.msra.mxu0 0.0
        %728 = vmatprep.mubr.f32.mxu0 0.0
        %729 = vmatmul.mubr.f32.gmra.mrb[0].mxu0 %v644
        %v730 = vpop.f32.mrb[0].mxu0
        %v731 = vadd.f32 0.0, %v730
        %v732 = vpop.f32.mrb[0].mxu0
        %733 = vdwg.mxu0
        %v734 = vld [vmem:[#allocation3] sm:$0x1]
        %v735 = vsub.f32 %v731, %v734
        %v736 = vstv %s645
        %v737 = vmul.f32 %v736, %v735
        %v738 = vsub.f32 %v644, %v737
        %s739 = ssub.f32 0.0, %s647
        %v740 = vstv %s739
        %v741 = vmax.f32 %v740, %v738
        %v742 = vstv %s647
        %v743 = vmin.f32 %v742, %v741
        %v744 = vsub.f32 %v738, %v743
        %s745 = sld [smem:[#allocation4 + $0x2]]
        %s746 = sld [smem:[#allocation9 + $0x2]]
        %s747 = smul.f32 %s745, %s746
        %v748 = vld [vmem:[#allocation2] sm:$0xff]
        %v749 = vld [vmem:[#allocation2 + $0x8] sm:$0xff]
        %v750 = vld [vmem:[#allocation2 + $0x10] sm:$0xff]
        %v751 = vld [vmem:[#allocation2 + $0x18] sm:$0xff]
        %v752 = vld [vmem:[#allocation2 + $0x20] sm:$0xff]
        %v753 = vld [vmem:[#allocation2 + $0x28] sm:$0xff]
        %v754 = vld [vmem:[#allocation2 + $0x30] sm:$0xff]
        %v755 = vld [vmem:[#allocation2 + $0x38] sm:$0xff]
        %v756 = vld [vmem:[#allocation2 + $0x40] sm:$0xff]
        %v757 = vld [vmem:[#allocation2 + $0x48] sm:$0xff]
        %v758 = vld [vmem:[#allocation2 + $0x50] sm:$0xff]
        %v759 = vld [vmem:[#allocation2 + $0x58] sm:$0xff]
        %v760 = vld [vmem:[#allocation2 + $0x60] sm:$0xff]
        %v761 = vld [vmem:[#allocation2 + $0x68] sm:$0xff]
        %v762 = vld [vmem:[#allocation2 + $0x70] sm:$0xff]
        %v763 = vld [vmem:[#allocation2 + $0x78] sm:$0xff]
        %764 = vmatprep.subr.mxu0 0.0
        %765 = vmatpush1.xpose.msra.mxu0 %v748
        %766 = vmatprep.subr.mxu0 0.0
        %767 = vmatpush1.xpose.msra.mxu0 %v749
        %768 = vmatprep.subr.mxu0 0.0
        %769 = vmatpush1.xpose.msra.mxu0 %v750
        %770 = vmatprep.subr.mxu0 0.0
        %771 = vmatpush1.xpose.msra.mxu0 %v751
        %772 = vmatprep.subr.mxu0 0.0
        %773 = vmatpush1.xpose.msra.mxu0 %v752
        %774 = vmatprep.subr.mxu0 0.0
        %775 = vmatpush1.xpose.msra.mxu0 %v753
        %776 = vmatprep.subr.mxu0 0.0
        %777 = vmatpush1.xpose.msra.mxu0 %v754
        %778 = vmatprep.subr.mxu0 0.0
        %779 = vmatpush1.xpose.msra.mxu0 %v755
        %780 = vmatprep.subr.mxu0 0.0
        %781 = vmatpush1.xpose.msra.mxu0 %v756
        %782 = vmatprep.subr.mxu0 0.0
        %783 = vmatpush1.xpose.msra.mxu0 %v757
        %784 = vmatprep.subr.mxu0 0.0
        %785 = vmatpush1.xpose.msra.mxu0 %v758
        %786 = vmatprep.subr.mxu0 0.0
        %787 = vmatpush1.xpose.msra.mxu0 %v759
        %788 = vmatprep.subr.mxu0 0.0
        %789 = vmatpush1.xpose.msra.mxu0 %v760
        %790 = vmatprep.subr.mxu0 0.0
        %791 = vmatpush1.xpose.msra.mxu0 %v761
        %792 = vmatprep.subr.mxu0 0.0
        %793 = vmatpush1.xpose.msra.mxu0 %v762
        %794 = vmatprep.subr.mxu0 0.0
        %795 = vmatpush1.xpose.msra.mxu0 %v763
        %796 = vmatprep.subr.mxu0 0.0
        %797 = vmatpush1.xpose.msra.mxu0 0.0
        %798 = vmatprep.subr.mxu0 0.0
        %799 = vmatpush1.xpose.msra.mxu0 0.0
        %800 = vmatprep.subr.mxu0 0.0
        %801 = vmatpush1.xpose.msra.mxu0 0.0
        %802 = vmatprep.subr.mxu0 0.0
        %803 = vmatpush1.xpose.msra.mxu0 0.0
        %804 = vmatprep.subr.mxu0 0.0
        %805 = vmatpush1.xpose.msra.mxu0 0.0
        %806 = vmatprep.subr.mxu0 0.0
        %807 = vmatpush1.xpose.msra.mxu0 0.0
        %808 = vmatprep.subr.mxu0 0.0
        %809 = vmatpush1.xpose.msra.mxu0 0.0
        %810 = vmatprep.subr.mxu0 0.0
        %811 = vmatpush1.xpose.msra.mxu0 0.0
        %812 = vmatprep.subr.mxu0 0.0
        %813 = vmatpush1.xpose.msra.mxu0 0.0
        %814 = vmatprep.subr.mxu0 0.0
        %815 = vmatpush1.xpose.msra.mxu0 0.0
        %816 = vmatprep.subr.mxu0 0.0
        %817 = vmatpush1.xpose.msra.mxu0 0.0
        %818 = vmatprep.subr.mxu0 0.0
        %819 = vmatpush1.xpose.msra.mxu0 0.0
        %820 = vmatprep.subr.mxu0 0.0
        %821 = vmatpush1.xpose.msra.mxu0 0.0
        %822 = vmatprep.subr.mxu0 0.0
        %823 = vmatpush1.xpose.msra.mxu0 0.0
        %824 = vmatprep.subr.mxu0 0.0
        %825 = vmatpush1.xpose.msra.mxu0 0.0
        %826 = vmatprep.subr.mxu0 0.0
        %827 = vmatpush1.xpose.msra.mxu0 0.0
        %828 = vmatprep.mubr.f32.mxu0 0.0
        %829 = vmatmul.mubr.f32.gmra.mrb[0].mxu0 %v744
        %v830 = vpop.f32.mrb[0].mxu0
        %v831 = vadd.f32 0.0, %v830
        %v832 = vpop.f32.mrb[0].mxu0
        %833 = vdwg.mxu0
        %v834 = vld [vmem:[#allocation3] sm:$0x1]
        %v835 = vsub.f32 %v831, %v834
        %v836 = vstv %s745
        %v837 = vmul.f32 %v836, %v835
        %v838 = vsub.f32 %v744, %v837
        %s839 = ssub.f32 0.0, %s747
        %v840 = vstv %s839
        %v841 = vmax.f32 %v840, %v838
        %v842 = vstv %s747
        %v843 = vmin.f32 %v842, %v841
        %v844 = vsub.f32 %v838, %v843
        %s845 = sld [smem:[#allocation4 + $0x3]]
        %s846 = sld [smem:[#allocation9 + $0x3]]
        %s847 = smul.f32 %s845, %s846
        %v848 = vld [vmem:[#allocation2] sm:$0xff]
        %v849 = vld [vmem:[#allocation2 + $0x8] sm:$0xff]
        %v850 = vld [vmem:[#allocation2 + $0x10] sm:$0xff]
        %v851 = vld [vmem:[#allocation2 + $0x18] sm:$0xff]
        %v852 = vld [vmem:[#allocation2 + $0x20] sm:$0xff]
        %v853 = vld [vmem:[#allocation2 + $0x28] sm:$0xff]
        %v854 = vld [vmem:[#allocation2 + $0x30] sm:$0xff]
        %v855 = vld [vmem:[#allocation2 + $0x38] sm:$0xff]
        %v856 = vld [vmem:[#allocation2 + $0x40] sm:$0xff]
        %v857 = vld [vmem:[#allocation2 + $0x48] sm:$0xff]
        %v858 = vld [vmem:[#allocation2 + $0x50] sm:$0xff]
        %v859 = vld [vmem:[#allocation2 + $0x58] sm:$0xff]
        %v860 = vld [vmem:[#allocation2 + $0x60] sm:$0xff]
        %v861 = vld [vmem:[#allocation2 + $0x68] sm:$0xff]
        %v862 = vld [vmem:[#allocation2 + $0x70] sm:$0xff]
        %v863 = vld [vmem:[#allocation2 + $0x78] sm:$0xff]
        %864 = vmatprep.subr.mxu0 0.0
        %865 = vmatpush1.xpose.msra.mxu0 %v848
        %866 = vmatprep.subr.mxu0 0.0
        %867 = vmatpush1.xpose.msra.mxu0 %v849
        %868 = vmatprep.subr.mxu0 0.0
        %869 = vmatpush1.xpose.msra.mxu0 %v850
        %870 = vmatprep.subr.mxu0 0.0
        %871 = vmatpush1.xpose.msra.mxu0 %v851
        %872 = vmatprep.subr.mxu0 0.0
        %873 = vmatpush1.xpose.msra.mxu0 %v852
        %874 = vmatprep.subr.mxu0 0.0
        %875 = vmatpush1.xpose.msra.mxu0 %v853
        %876 = vmatprep.subr.mxu0 0.0
        %877 = vmatpush1.xpose.msra.mxu0 %v854
        %878 = vmatprep.subr.mxu0 0.0
        %879 = vmatpush1.xpose.msra.mxu0 %v855
        %880 = vmatprep.subr.mxu0 0.0
        %881 = vmatpush1.xpose.msra.mxu0 %v856
        %882 = vmatprep.subr.mxu0 0.0
        %883 = vmatpush1.xpose.msra.mxu0 %v857
        %884 = vmatprep.subr.mxu0 0.0
        %885 = vmatpush1.xpose.msra.mxu0 %v858
        %886 = vmatprep.subr.mxu0 0.0
        %887 = vmatpush1.xpose.msra.mxu0 %v859
        %888 = vmatprep.subr.mxu0 0.0
        %889 = vmatpush1.xpose.msra.mxu0 %v860
        %890 = vmatprep.subr.mxu0 0.0
        %891 = vmatpush1.xpose.msra.mxu0 %v861
        %892 = vmatprep.subr.mxu0 0.0
        %893 = vmatpush1.xpose.msra.mxu0 %v862
        %894 = vmatprep.subr.mxu0 0.0
        %895 = vmatpush1.xpose.msra.mxu0 %v863
        %896 = vmatprep.subr.mxu0 0.0
        %897 = vmatpush1.xpose.msra.mxu0 0.0
        %898 = vmatprep.subr.mxu0 0.0
        %899 = vmatpush1.xpose.msra.mxu0 0.0
        %900 = vmatprep.subr.mxu0 0.0
        %901 = vmatpush1.xpose.msra.mxu0 0.0
        %902 = vmatprep.subr.mxu0 0.0
        %903 = vmatpush1.xpose.msra.mxu0 0.0
        %904 = vmatprep.subr.mxu0 0.0
        %905 = vmatpush1.xpose.msra.mxu0 0.0
        %906 = vmatprep.subr.mxu0 0.0
        %907 = vmatpush1.xpose.msra.mxu0 0.0
        %908 = vmatprep.subr.mxu0 0.0
        %909 = vmatpush1.xpose.msra.mxu0 0.0
        %910 = vmatprep.subr.mxu0 0.0
        %911 = vmatpush1.xpose.msra.mxu0 0.0
        %912 = vmatprep.subr.mxu0 0.0
        %913 = vmatpush1.xpose.msra.mxu0 0.0
        %914 = vmatprep.subr.mxu0 0.0
        %915 = vmatpush1.xpose.msra.mxu0 0.0
        %916 = vmatprep.subr.mxu0 0.0
        %917 = vmatpush1.xpose.msra.mxu0 0.0
        %918 = vmatprep.subr.mxu0 0.0
        %919 = vmatpush1.xpose.msra.mxu0 0.0
        %920 = vmatprep.subr.mxu0 0.0
        %921 = vmatpush1.xpose.msra.mxu0 0.0
        %922 = vmatprep.subr.mxu0 0.0
        %923 = vmatpush1.xpose.msra.mxu0 0.0
        %924 = vmatprep.subr.mxu0 0.0
        %925 = vmatpush1.xpose.msra.mxu0 0.0
        %926 = vmatprep.subr.mxu0 0.0
        %927 = vmatpush1.xpose.msra.mxu0 0.0
        %928 = vmatprep.mubr.f32.mxu0 0.0
        %929 = vmatmul.mubr.f32.gmra.mrb[0].mxu0 %v844
        %v930 = vpop.f32.mrb[0].mxu0
        %v931 = vadd.f32 0.0, %v930
        %v932 = vpop.f32.mrb[0].mxu0
        %933 = vdwg.mxu0
        %v934 = vld [vmem:[#allocation3] sm:$0x1]
        %v935 = vsub.f32 %v931, %v934
        %v936 = vstv %s845
        %v937 = vmul.f32 %v936, %v935
        %v938 = vsub.f32 %v844, %v937
        %s939 = ssub.f32 0.0, %s847
        %v940 = vstv %s939
        %v941 = vmax.f32 %v940, %v938
        %v942 = vstv %s847
        %v943 = vmin.f32 %v942, %v941
        %v944 = vsub.f32 %v938, %v943
        %945 = vst [vmem:[%s288] sm:$0x1] %v944
        %s946 = sand.u32 %s152, 1
        %s947 = scalar_lea.sflag [#allocation6], %s946
        %s948 = sand.u32 %s152, 1
        %s949 = scalar_lea.vmem [#allocation11], %s948
        // Predicated region
        $region53: #{tpu_custom_call.1} parent=39 // pred_check
          %p950 = pneg %p162
        $region54: #{tpu_custom_call.1} parent=39 // pred_check_branch
          %952 = sbr.rel (%p950) target = $region56
        $region55: #{tpu_custom_call.1} parent=39 // pred_region
          %s954 = ssub.s32 16, 16
          %955 = vsyncadd %s947, %s954
          %s956 = smul.addr %s24, 16
          %s957 = scalar_lea.hbm %s5, %s956
          %s959 = sshll.u32 %s949, 4
          %s960 = int_to_ptr.vmem [resolvable:$true] %s959
          %962 = dma.vmem_to_hbm [thread:$0]  %s960, 16, %s957, %s947
        $region56: #{tpu_custom_call.1} parent=39 // pred_fallthru
          _
      $region40: #{tpu_custom_call.1} parent=5 // pred_fallthru
        _
      %p963 = scmp.le.s32.totalorder 2, %s19
      // Predicated region
      $region57: #{tpu_custom_call.1} parent=5 // pred_check
        %p964 = pneg %p963
      $region58: #{tpu_custom_call.1} parent=5 // pred_check_branch
        %966 = sbr.rel (%p964) target = $region60
      $region59: #{tpu_custom_call.1} parent=5 // pred_region
        %s967 = ssub.s32 %s19, 2
        // Predicated region
        $region61: #{tpu_custom_call.1} parent=59 // pred_check
          %p968 = pneg %p168
        $region62: #{tpu_custom_call.1} parent=59 // pred_check_branch
          %970 = sbr.rel (%p968) target = $region64
        $region63: #{tpu_custom_call.1} parent=59 // pred_region
          %s971 = sand.u32 %s153, 1
          %s972 = scalar_lea.sflag [#allocation6], %s971
          %s973 = sand.u32 %s153, 1
          %s974 = scalar_lea.vmem [#allocation11], %s973
          %975 = dma.done %s972, 16
        $region64: #{tpu_custom_call.1} parent=59 // pred_fallthru
          _
      $region60: #{tpu_custom_call.1} parent=5 // pred_fallthru
        _
    $region6: #{tpu_custom_call.1} parent=1 // loop_footer
      %s23 = sadd.s32 1, %s19
    $region7: #{tpu_custom_call.1} parent=1 // loop_footer_branch
      %18 = sbr.rel target = $region3
    $region8: #{tpu_custom_call.1} parent=1 // loop_exit
      _
    %976 = vsyncpa [#allocation5], 1
    %s977 = scalar_lea.sflag [#allocation5], 1
    %978 = vsyncpa %s977, 1
    %979 = vsyncpa [#allocation6], 1
    %s980 = scalar_lea.sflag [#allocation6], 1
    %981 = vsyncpa %s980, 1
    %982 = vsyncpa [#allocation7], 1
    %s983 = scalar_lea.sflag [#allocation7], 1
    %984 = vsyncpa %s983, 1
    %985 = vsyncpa [#allocation8], 1
    %s986 = scalar_lea.sflag [#allocation8], 1
    %987 = vsyncpa %s986, 1

</llo_original>
